<compile_context>
chip_gen: v7x
topology: tpu7x:2x2x1
jax: 0.10.0
libtpu: 0.0.40
codegen_flags: <defaults>
</compile_context>

<pallas_src>
import jax
import jax.numpy as jnp
from jax.experimental import pallas as pl
from jax.experimental.pallas import tpu as pltpu


def _silu_kernel(x_ref, o_ref):
    x = x_ref[...]
    # Compute in f32: exp goes to the EUP (its own bundle slot), the mul to
    # the VPU — both are hidden under the HBM DMA, so the upcast is free and
    # keeps full accuracy on v5e (which has no bf16 VPU/EUP).
    xf = x.astype(jnp.float32)
    o_ref[...] = (xf * jax.nn.sigmoid(xf)).astype(o_ref.dtype)


# Candidate lane widths (multiples of 128), largest first — wider lane-dense
# output slabs give fully unmasked `vst` stores.
_LANE_CHOICES = (8192, 4096, 2048, 1024, 512, 256, 128)
# ~2 MiB f32 per tile (in + out, each double-buffered => ~8 MiB resident).
_TARGET_TILE_ELEMS = 512 * 1024


def _choose_lanes(n, last_dim):
    for cand in _LANE_CHOICES:
        if n % cand == 0:
            return cand
    # Fallback: keep the original hidden dim on lanes.  It equals the full
    # array extent, so the block-shape constraint is still satisfied (stores
    # may be masked, but we avoid an extra HBM pad/slice pass).
    return last_dim if last_dim else 1


def _choose_row_tile(rows, lanes):
    target = max(1, _TARGET_TILE_ELEMS // lanes)
    if rows <= target:
        return rows  # single block along rows (equals full extent)
    t = max(8, (target // 8) * 8)
    # Prefer an exact divisor of `rows` (multiple of 8) near the target so no
    # grid step issues a masked partial tile.  Bounded scan.
    cand = t
    for _ in range(64):
        if cand < 8:
            break
        if rows % cand == 0:
            return cand
        cand -= 8
    return t  # partial last tile; Pallas masks it correctly


def silu(x):
    """SiLU activation: x * sigmoid(x), computed in a Pallas TPU kernel."""
    orig_shape = x.shape
    n = x.size
    if n == 0:
        return x

    last_dim = orig_shape[-1] if len(orig_shape) else 1
    lanes = _choose_lanes(n, last_dim)
    rows = n // lanes
    x2d = x.reshape(rows, lanes)

    tile_r = _choose_row_tile(rows, lanes)
    grid = (pl.cdiv(rows, tile_r),)

    out = pl.pallas_call(
        _silu_kernel,
        out_shape=jax.ShapeDtypeStruct((rows, lanes), x.dtype),
        grid=grid,
        in_specs=[pl.BlockSpec((tile_r, lanes), lambda i: (i, 0))],
        out_specs=pl.BlockSpec((tile_r, lanes), lambda i: (i, 0)),
        compiler_params=pltpu.CompilerParams(
            dimension_semantics=("parallel",),
        ),
    )(x2d)
    return out.reshape(orig_shape)


if __name__ == "__main__":
    key = jax.random.PRNGKey(0)

    # Primary check: batch=2, seq=8, hidden=32 — a transformer MLP activation.
    x = jax.random.normal(key, (2, 8, 32), dtype=jnp.float32)
    y = silu(x)
    jax.block_until_ready(y)
    y_ref = x * jax.nn.sigmoid(x)
    assert y.shape == x.shape and y.dtype == x.dtype
    assert jnp.allclose(y, y_ref, atol=1e-5, rtol=1e-5)

    # Secondary check: larger shape exercising the multi-tile pipelined path.
    k2 = jax.random.PRNGKey(1)
    x2 = jax.random.normal(k2, (8, 256, 512), dtype=jnp.float32)
    y2 = silu(x2)
    jax.block_until_ready(y2)
    assert jnp.allclose(y2, x2 * jax.nn.sigmoid(x2), atol=1e-5, rtol=1e-5)

    # Tertiary check: odd shape taking the non-lane-dense fallback path.
    k3 = jax.random.PRNGKey(2)
    x3 = jax.random.normal(k3, (2, 5, 33), dtype=jnp.float32)
    y3 = silu(x3)
    jax.block_until_ready(y3)
    assert jnp.allclose(y3, x3 * jax.nn.sigmoid(x3), atol=1e-5, rtol=1e-5)

    # Quaternary check: bf16 input (dtype preserved, f32 internal compute).
    x4 = jax.random.normal(jax.random.PRNGKey(3), (4, 128, 256),
                           dtype=jnp.bfloat16)
    y4 = silu(x4)
    jax.block_until_ready(y4)
    ref4 = (x4.astype(jnp.float32) * jax.nn.sigmoid(x4.astype(jnp.float32))
            ).astype(jnp.bfloat16)
    assert y4.dtype == jnp.bfloat16
    assert jnp.allclose(y4.astype(jnp.float32), ref4.astype(jnp.float32),
                        atol=1e-2, rtol=1e-2)

    print("KERNEL_OK")
</pallas_src>

<mosaic_0001>
module attributes {stable_mosaic.version = 11 : i64} {
  func.func @_silu_kernel(%arg0: i32, %arg1: memref<1x512xf32, #tpu.memory_space<vmem>>, %arg2: memref<1x512xf32, #tpu.memory_space<vmem>>) attributes {dimension_semantics = [#tpu.dimension_semantics<parallel>], iteration_bounds = array<i64: 1>, scalar_prefetch = 0 : i64, scratch_operands = 0 : i64, tpu.core_type = #tpu.core_type<tc>, window_params = [{transform_indices = @transform_0, window_bounds = array<i64: 1, 512>}, {transform_indices = @transform_1, window_bounds = array<i64: 1, 512>}]} {
    %c0 = arith.constant 0 : index
    %c0_0 = arith.constant 0 : index
    %0 = vector.load %arg1[%c0, %c0_0] : memref<1x512xf32, #tpu.memory_space<vmem>>, vector<1x512xf32>
    %1 = arith.negf %0 : vector<1x512xf32>
    %2 = math.exp %1 : vector<1x512xf32>
    %cst = arith.constant 1.000000e+00 : f32
    %3 = vector.broadcast %cst : f32 to vector<1x512xf32>
    %4 = arith.addf %3, %2 : vector<1x512xf32>
    %5 = arith.divf %3, %4 : vector<1x512xf32>
    %6 = arith.mulf %0, %5 : vector<1x512xf32>
    %c0_1 = arith.constant 0 : index
    %c0_2 = arith.constant 0 : index
    %7 = vector.load %arg2[%c0_1, %c0_2] : memref<1x512xf32, #tpu.memory_space<vmem>>, vector<1x512xf32>
    tpu.vector_store %arg2[%c0_1, %c0_2], %6 {strides = array<i32>} : memref<1x512xf32, #tpu.memory_space<vmem>>, vector<1x512xf32>,
    return
  }
  func.func @transform_0(%arg0: i32) -> (i32, i32) {
    %c0_i32 = arith.constant 0 : i32
    %c0_i32_0 = arith.constant 0 : i32
    return %arg0, %c0_i32 : i32, i32
  }
  func.func @transform_1(%arg0: i32) -> (i32, i32) {
    %c0_i32 = arith.constant 0 : i32
    %c0_i32_0 = arith.constant 0 : i32
    return %arg0, %c0_i32 : i32, i32
  }
}

</mosaic_0001>

<llo_original>
// kernel: tpu_custom_call.1
$region0: #{tpu_custom_call.1}
  #allocation0 [shape = 'u32[]', space=smem, size = 0x4, offset = 0x4, fixed_abs, tag = 'smem constant byte address 0x4 - core index']
  #allocation1 [shape = 'u32[144,128]{1,0:T(1,128)}', space=vmem, size = 0x12000, scoped, tag = 'internal scratch']
  %s0 = inlined_call_operand.hbm [shape: f32[1,512], index: 0, kind: input, shape index: {}]
  %s1 = inlined_call_operand.hbm [shape: f32[1,512], index: 1, kind: output, shape index: {}]
  %s2 = sld [smem:[#allocation0]]
  $region18: #{tpu_custom_call.1} parent=0
    _
  %s4 = ssub.s32 1, %s2
  %s5 = scalar_select 0, %s4, %s2
  $region1: #{tpu_custom_call.1} parent=0
    #allocation2 [shape = 'u8[2048]{0}', space=vmem, size = 0x800, scoped, tag = 'input window, operand 0, single buffered']
    #allocation3 [shape = 's32[1]{0}', space=sflag, size = 0x4, scoped, tag = 'scoped memory for tpu_custom_call.1']
    #allocation4 [shape = 's32[1]{0}', space=sflag, size = 0x4, scoped, tag = 'scoped memory for tpu_custom_call.1']
    #allocation5 [shape = 'u8[2048]{0}', space=vmem, size = 0x800, scoped, tag = 'output window, operand 0, single buffered']
    %6 = vsyncpa [#allocation3], 0
    %7 = vsyncpa [#allocation4], 0
    // Predicated region
    $region2: #{tpu_custom_call.1} parent=1 // pred_check
      _
    $region3: #{tpu_custom_call.1} parent=1 // pred_check_branch
      %9 = sbr.rel (0) target = $region5
    $region4: #{tpu_custom_call.1} parent=1 // pred_region
      %s11 = ssub.s32 64, 64
      %12 = vsyncadd [#allocation3], %s11
      %s14 = sshll.u32 [#allocation2], 4
      %s15 = int_to_ptr.vmem [resolvable:$true] %s14
      %17 = dma.hbm_to_vmem [thread:$0]  %s0, 64, %s15, [#allocation3]
    $region5: #{tpu_custom_call.1} parent=1 // pred_fallthru
      _
    // Predicated region
    $region6: #{tpu_custom_call.1} parent=1 // pred_check
      _
    $region7: #{tpu_custom_call.1} parent=1 // pred_check_branch
      %19 = sbr.rel (0) target = $region9
    $region8: #{tpu_custom_call.1} parent=1 // pred_region
      %20 = dma.done [#allocation3], 64
    $region9: #{tpu_custom_call.1} parent=1 // pred_fallthru
      _
    %v21 = vld [vmem:[#allocation2] sm:$0xf]
    %v22 = vxor.u32 %v21, 2147483648
    %v23 = vmul.f32 %v22, 1.442695
    %v24 = vpow.pop %v23
    %v25 = vadd.f32 %v24, 1.0
    %v26 = vrcp.pop %v25
    %v27 = vmul.f32 1.0, %v26
    %v28 = vmul.f32 %v21, %v27
    %v29 = vlaneseq
    %vm30 = vcmp.ge.s32.totalorder %v29, 0
    %vm31 = vcmp.lt.s32.totalorder %v29, 512
    %vm32 = vmand %vm30, %vm31
    %33 = vst.msk [vmem:[#allocation5] sm:$0xf] %vm32, %v28
    // Predicated region
    $region10: #{tpu_custom_call.1} parent=1 // pred_check
      _
    $region11: #{tpu_custom_call.1} parent=1 // pred_check_branch
      %35 = sbr.rel (0) target = $region13
    $region12: #{tpu_custom_call.1} parent=1 // pred_region
      %s37 = ssub.s32 64, 64
      %38 = vsyncadd [#allocation4], %s37
      %s40 = sshll.u32 [#allocation5], 4
      %s41 = int_to_ptr.vmem [resolvable:$true] %s40
      %43 = dma.vmem_to_hbm [thread:$0]  %s41, 64, %s1, [#allocation4]
    $region13: #{tpu_custom_call.1} parent=1 // pred_fallthru
      _
    // Predicated region
    $region14: #{tpu_custom_call.1} parent=1 // pred_check
      _
    $region15: #{tpu_custom_call.1} parent=1 // pred_check_branch
      %45 = sbr.rel (0) target = $region17
    $region16: #{tpu_custom_call.1} parent=1 // pred_region
      %46 = dma.done [#allocation4], 64
    $region17: #{tpu_custom_call.1} parent=1 // pred_fallthru
      _
    %47 = vsyncpa [#allocation3], 1
    %48 = vsyncpa [#allocation4], 1

</llo_original>
